<compile_context>
chip_gen: v7x
topology: tpu7x:2x2x1
jax: 0.10.0
libtpu: 0.0.40
codegen_flags: <defaults>
</compile_context>

<pallas_src>
import jax
import jax.numpy as jnp
from jax import lax
from jax.experimental import pallas as pl
from jax.experimental.pallas import tpu as pltpu


# ----------------------------------------------------------------------------
# Prologue: adaLN modulation for all batch elements at once.
#   shift = SiLU(cond0) @ w_shift + b_shift
#   scale = SiLU(cond0) @ w_scale + b_scale
# ----------------------------------------------------------------------------
def _adaln_kernel(c_ref, ws_ref, bs_ref, wc_ref, bc_ref, shift_ref, scale_ref):
    c = c_ref[...].astype(jnp.float32)            # (B, C)
    h = c * jax.nn.sigmoid(c)                     # SiLU in f32
    shift_ref[...] = (
        jnp.dot(h, ws_ref[...].astype(jnp.float32),
                preferred_element_type=jnp.float32) + bs_ref[...]
    ).astype(shift_ref.dtype)
    scale_ref[...] = (
        jnp.dot(h, wc_ref[...].astype(jnp.float32),
                preferred_element_type=jnp.float32) + bc_ref[...]
    ).astype(scale_ref.dtype)


# ----------------------------------------------------------------------------
# Main fused kernel: LayerNorm (no affine, eps=1e-6) + modulate + final linear.
# Per grid step: one batch element, one L tile.
#   x_ref:     (Lt, C)
#   shift_ref: (1, C)     per-batch shift (broadcast over Lt)
#   scale_ref: (1, C)     per-batch scale (broadcast over Lt)
#   w_ref:     (C, Dp)    final linear weight, lane-padded to Dp (mult of 128)
#   b_ref:     (1, Dp)
#   out_ref:   (Lt, Dp)   lane-dense output block
# ----------------------------------------------------------------------------
def _final_layer_kernel(x_ref, shift_ref, scale_ref, w_ref, b_ref, out_ref):
    x = x_ref[...].astype(jnp.float32)                      # (Lt, C)

    # LayerNorm over the feature dim (elementwise_affine=False, eps=1e-6).
    mean = jnp.mean(x, axis=-1, keepdims=True)
    xc = x - mean
    var = jnp.mean(xc * xc, axis=-1, keepdims=True)
    xn = xc * lax.rsqrt(var + 1e-6)

    # modulate: x * (1 + scale) + shift   (per-batch (1,C) broadcast over Lt)
    xm = xn * (1.0 + scale_ref[...].astype(jnp.float32)) \
         + shift_ref[...].astype(jnp.float32)

    # Final linear, full-width MXU (N = Dp, multiple of 128), f32 accumulate.
    y = jnp.dot(xm, w_ref[...], preferred_element_type=jnp.float32) + b_ref[...]
    out_ref[...] = y.astype(out_ref.dtype)


def _pick_l_tile(L, C, itemsize, budget_bytes=2 * 1024 * 1024):
    """Largest L-tile (divisor of L) whose x block fits a modest VMEM budget,
    leaving room for double-buffering + output block even on v7x (64 MiB)."""
    for cand in (2048, 1024, 512, 256, 128, 64, 32, 16, 8):
        if L % cand == 0 and cand * C * itemsize <= budget_bytes:
            return cand
    return L


def vision_transformer_final_layer(input_tensor, conditioning_tensor, params):
    """Pallas implementation of VisionTransformerFinalLayer.forward
    (concat_cond=False path)."""
    B, L, C = input_tensor.shape
    w_ada = params["w_ada"]      # (C, 2C)
    b_ada = params["b_ada"]      # (2C,)
    w_lin = params["w_lin"]      # (C, D)
    b_lin = params["b_lin"]      # (D,)
    D = w_lin.shape[1]

    # ---- adaLN prologue (hoisted out of the per-tile grid) -----------------
    # Split the 2C-wide adaLN weight into shift/scale halves in the wrapper so
    # the kernel never slices the lane dim at a non-128 boundary.
    w_shift = w_ada[:, :C]
    w_scale = w_ada[:, C:]
    b_shift = b_ada[:C].reshape(1, C)
    b_scale = b_ada[C:].reshape(1, C)
    cond0 = conditioning_tensor[:, 0, :]                     # (B, C)

    shift, scale = pl.pallas_call(
        _adaln_kernel,
        out_shape=(jax.ShapeDtypeStruct((B, C), jnp.float32),
                   jax.ShapeDtypeStruct((B, C), jnp.float32)),
    )(cond0, w_shift, b_shift, w_scale, b_scale)
    shift = shift.reshape(B, 1, C)
    scale = scale.reshape(B, 1, C)

    # ---- lane-dense output: pad final-linear N dim up to a multiple of 128 -
    Dp = max(128, ((D + 127) // 128) * 128)
    if Dp != D:
        w_lin_p = jnp.pad(w_lin, ((0, 0), (0, Dp - D)))
        b_lin_p = jnp.pad(b_lin, (0, Dp - D)).reshape(1, Dp)
    else:
        w_lin_p = w_lin
        b_lin_p = b_lin.reshape(1, Dp)

    Lt = _pick_l_tile(L, C, input_tensor.dtype.itemsize)
    grid = (B, L // Lt)

    out_padded = pl.pallas_call(
        _final_layer_kernel,
        out_shape=jax.ShapeDtypeStruct((B, L, Dp), input_tensor.dtype),
        grid_spec=pltpu.PrefetchScalarGridSpec(
            num_scalar_prefetch=0,
            grid=grid,
            in_specs=[
                # x: one batch element, one L tile
                pl.BlockSpec((pl.Squeezed(), Lt, C), lambda b, l: (b, l, 0)),
                # per-batch shift / scale (constant across L tiles)
                pl.BlockSpec((pl.Squeezed(), 1, C), lambda b, l: (b, 0, 0)),
                pl.BlockSpec((pl.Squeezed(), 1, C), lambda b, l: (b, 0, 0)),
                # final-linear weight / bias (constant across the grid)
                pl.BlockSpec((C, Dp), lambda b, l: (0, 0)),
                pl.BlockSpec((1, Dp), lambda b, l: (0, 0)),
            ],
            out_specs=pl.BlockSpec((pl.Squeezed(), Lt, Dp),
                                   lambda b, l: (b, l, 0)),
        ),
        compiler_params=pltpu.CompilerParams(
            dimension_semantics=("parallel", "parallel")),
    )(input_tensor, shift, scale, w_lin_p, b_lin_p)

    return out_padded[..., :D] if Dp != D else out_padded


def _reference(input_tensor, conditioning_tensor, params):
    """Pure-JAX reference mirroring the PyTorch forward (concat_cond=False)."""
    C = input_tensor.shape[-1]
    ada_cond = conditioning_tensor[:, 0:1, :]                       # (B, 1, C)
    h = ada_cond * jax.nn.sigmoid(ada_cond)                         # SiLU
    ada = jnp.einsum("blc,cd->bld", h, params["w_ada"]) + params["b_ada"]
    shift, scale = ada[..., :C], ada[..., C:]
    mean = jnp.mean(input_tensor, axis=-1, keepdims=True)
    xc = input_tensor - mean
    var = jnp.mean(xc * xc, axis=-1, keepdims=True)
    xn = xc / jnp.sqrt(var + 1e-6)
    xm = xn * (1.0 + scale) + shift
    return jnp.einsum("blc,cd->bld", xm, params["w_lin"]) + params["b_lin"]


if __name__ == "__main__":
    # Module hyper-parameters (small, consistent with the forward pass):
    feature_dim = 32
    image_patch_size = (2, 2)
    output_channels = 4
    out_dim = image_patch_size[0] * image_patch_size[1] * output_channels  # 16

    B, L, Lc = 2, 8, 8

    key = jax.random.PRNGKey(0)
    kx, kc, k1, k2, k3, k4 = jax.random.split(key, 6)

    x = jax.random.normal(kx, (B, L, feature_dim), dtype=jnp.float32)
    cond = jax.random.normal(kc, (B, Lc, feature_dim), dtype=jnp.float32)

    # Deterministic parameter init (shapes from nn.Linear in __init__),
    # stored as (in, out).
    params = {
        "w_ada": 0.05 * jax.random.normal(k1, (feature_dim, 2 * feature_dim),
                                          dtype=jnp.float32),
        "b_ada": 0.05 * jax.random.normal(k2, (2 * feature_dim,),
                                          dtype=jnp.float32),
        "w_lin": 0.05 * jax.random.normal(k3, (feature_dim, out_dim),
                                          dtype=jnp.float32),
        "b_lin": 0.05 * jax.random.normal(k4, (out_dim,), dtype=jnp.float32),
    }

    out = vision_transformer_final_layer(x, cond, params)
    out = jax.block_until_ready(out)

    ref = _reference(x, cond, params)
    assert out.shape == (B, L, out_dim), out.shape
    assert jnp.allclose(out, ref, atol=1e-4, rtol=1e-4), "mismatch vs reference"

    # TODO(synk): concat_cond=True branch (concat + split) is pure reshape glue
    # and is not exercised by the default forward path; not implemented here.
    print("KERNEL_OK")
</pallas_src>

<mosaic_0001>
module attributes {stable_mosaic.version = 11 : i64} {
  func.func @_adaln_kernel(%arg0: memref<2x32xf32, #tpu.memory_space<vmem>>, %arg1: memref<32x32xf32, #tpu.memory_space<vmem>>, %arg2: memref<1x32xf32, #tpu.memory_space<vmem>>, %arg3: memref<32x32xf32, #tpu.memory_space<vmem>>, %arg4: memref<1x32xf32, #tpu.memory_space<vmem>>, %arg5: memref<2x32xf32, #tpu.memory_space<vmem>>, %arg6: memref<2x32xf32, #tpu.memory_space<vmem>>) attributes {dimension_semantics = [], scalar_prefetch = 0 : i64, scratch_operands = 0 : i64, tpu.core_type = #tpu.core_type<tc>} {
    %c0 = arith.constant 0 : index
    %c0_0 = arith.constant 0 : index
    %0 = vector.load %arg0[%c0, %c0_0] : memref<2x32xf32, #tpu.memory_space<vmem>>, vector<2x32xf32>
    %1 = arith.negf %0 : vector<2x32xf32>
    %2 = math.exp %1 : vector<2x32xf32>
    %cst = arith.constant 1.000000e+00 : f32
    %3 = vector.broadcast %cst : f32 to vector<2x32xf32>
    %4 = arith.addf %3, %2 : vector<2x32xf32>
    %5 = arith.divf %3, %4 : vector<2x32xf32>
    %6 = arith.mulf %0, %5 : vector<2x32xf32>
    %c0_1 = arith.constant 0 : index
    %c0_2 = arith.constant 0 : index
    %7 = vector.load %arg1[%c0_1, %c0_2] : memref<32x32xf32, #tpu.memory_space<vmem>>, vector<32x32xf32>
    %cst_3 = arith.constant dense<0.000000e+00> : vector<2x32xf32>
    %8 = tpu.matmul %6, %7, %cst_3 {dimension_numbers = #tpu.dot_dimension_numbers<[1], [0], [0], [1], [0, 0, 1, 1], [], []>} : vector<2x32xf32>, vector<32x32xf32>, vector<2x32xf32> -> vector<2x32xf32>
    %c0_4 = arith.constant 0 : index
    %c0_5 = arith.constant 0 : index
    %9 = vector.load %arg2[%c0_4, %c0_5] : memref<1x32xf32, #tpu.memory_space<vmem>>, vector<1x32xf32>
    %10 = vector.broadcast %9 : vector<1x32xf32> to vector<2x32xf32>
    %11 = arith.addf %8, %10 : vector<2x32xf32>
    %c0_6 = arith.constant 0 : index
    %c0_7 = arith.constant 0 : index
    %12 = vector.load %arg5[%c0_6, %c0_7] : memref<2x32xf32, #tpu.memory_space<vmem>>, vector<2x32xf32>
    tpu.vector_store %arg5[%c0_6, %c0_7], %11 {strides = array<i32>} : memref<2x32xf32, #tpu.memory_space<vmem>>, vector<2x32xf32>,
    %c0_8 = arith.constant 0 : index
    %c0_9 = arith.constant 0 : index
    %13 = vector.load %arg3[%c0_8, %c0_9] : memref<32x32xf32, #tpu.memory_space<vmem>>, vector<32x32xf32>
    %cst_10 = arith.constant dense<0.000000e+00> : vector<2x32xf32>
    %14 = tpu.matmul %6, %13, %cst_10 {dimension_numbers = #tpu.dot_dimension_numbers<[1], [0], [0], [1], [0, 0, 1, 1], [], []>} : vector<2x32xf32>, vector<32x32xf32>, vector<2x32xf32> -> vector<2x32xf32>
    %c0_11 = arith.constant 0 : index
    %c0_12 = arith.constant 0 : index
    %15 = vector.load %arg4[%c0_11, %c0_12] : memref<1x32xf32, #tpu.memory_space<vmem>>, vector<1x32xf32>
    %16 = vector.broadcast %15 : vector<1x32xf32> to vector<2x32xf32>
    %17 = arith.addf %14, %16 : vector<2x32xf32>
    %c0_13 = arith.constant 0 : index
    %c0_14 = arith.constant 0 : index
    %18 = vector.load %arg6[%c0_13, %c0_14] : memref<2x32xf32, #tpu.memory_space<vmem>>, vector<2x32xf32>
    tpu.vector_store %arg6[%c0_13, %c0_14], %17 {strides = array<i32>} : memref<2x32xf32, #tpu.memory_space<vmem>>, vector<2x32xf32>,
    return
  }
}

</mosaic_0001>

<llo_original>
// kernel: tpu_custom_call.1
$region0: #{tpu_custom_call.1}
  #allocation0 [shape = 'u32[]', space=smem, size = 0x4, offset = 0x4, fixed_abs, tag = 'smem constant byte address 0x4 - core index']
  #allocation1 [shape = 'u32[144,128]{1,0:T(1,128)}', space=vmem, size = 0x12000, scoped, tag = 'internal scratch']
  %s0 = inlined_call_operand.hbm [shape: f32[2,32], index: 0, kind: input, shape index: {}]
  %s1 = inlined_call_operand.hbm [shape: f32[32,32], index: 1, kind: input, shape index: {}]
  %s2 = inlined_call_operand.vmem [shape: f32[1,32], index: 2, kind: input, shape index: {}]
  %s3 = inlined_call_operand.hbm [shape: f32[32,32], index: 3, kind: input, shape index: {}]
  %s4 = inlined_call_operand.vmem [shape: f32[1,32], index: 4, kind: input, shape index: {}]
  %s5 = inlined_call_operand.hbm [shape: f32[2,32], index: 5, kind: output, shape index: {0}]
  %s6 = inlined_call_operand.hbm [shape: f32[2,32], index: 6, kind: output, shape index: {1}]
  %7 = xla_tuple %s5, %s6
  %s8 = sld [smem:[#allocation0]]
  $region50: #{tpu_custom_call.1} parent=0
    _
  %s10 = ssub.s32 1, %s8
  %s11 = scalar_select 0, %s10, %s8
  $region1: #{tpu_custom_call.1} parent=0
    #allocation2 [shape = 'u8[1024]{0}', space=vmem, size = 0x400, scoped, tag = 'input window, operand 0, single buffered']
    #allocation3 [shape = 's32[1]{0}', space=sflag, size = 0x4, scoped, tag = 'scoped memory for tpu_custom_call.1']
    #allocation4 [shape = 's32[1]{0}', space=sflag, size = 0x4, scoped, tag = 'scoped memory for tpu_custom_call.1']
    #allocation5 [shape = 'u8[16384]{0}', space=vmem, size = 0x4000, scoped, tag = 'input window, operand 1, single buffered']
    #allocation6 [shape = 's32[1]{0}', space=sflag, size = 0x4, scoped, tag = 'scoped memory for tpu_custom_call.1']
    #allocation7 [shape = 'u8[16384]{0}', space=vmem, size = 0x4000, scoped, tag = 'input window, operand 3, single buffered']
    #allocation8 [shape = 'u8[1024]{0}', space=vmem, size = 0x400, scoped, tag = 'output window, operand 0, single buffered']
    #allocation9 [shape = 'u8[1024]{0}', space=vmem, size = 0x400, scoped, tag = 'output window, operand 1, single buffered']
    #allocation10 [shape = 's32[1]{0}', space=sflag, size = 0x4, scoped, tag = 'scoped memory for tpu_custom_call.1']
    %12 = vsyncpa [#allocation3], 0
    %13 = vsyncpa [#allocation6], 0
    %14 = vsyncpa [#allocation4], 0
    %15 = vsyncpa [#allocation10], 0
    // Predicated region
    $region2: #{tpu_custom_call.1} parent=1 // pred_check
      _
    $region3: #{tpu_custom_call.1} parent=1 // pred_check_branch
      %17 = sbr.rel (0) target = $region5
    $region4: #{tpu_custom_call.1} parent=1 // pred_region
      %s19 = ssub.s32 32, 32
      %20 = vsyncadd [#allocation3], %s19
      %s22 = sshll.u32 [#allocation2], 4
      %s23 = int_to_ptr.vmem [resolvable:$true] %s22
      %25 = dma.hbm_to_vmem [thread:$0]  %s0, 32, %s23, [#allocation3]
    $region5: #{tpu_custom_call.1} parent=1 // pred_fallthru
      _
    // Predicated region
    $region6: #{tpu_custom_call.1} parent=1 // pred_check
      _
    $region7: #{tpu_custom_call.1} parent=1 // pred_check_branch
      %27 = sbr.rel (0) target = $region9
    $region8: #{tpu_custom_call.1} parent=1 // pred_region
      %s29 = ssub.s32 512, 512
      %30 = vsyncadd [#allocation6], %s29
      %s31 = sshll.u32 [#allocation5], 4
      %s32 = int_to_ptr.vmem [resolvable:$true] %s31
      %37 = dma.hbm_to_vmem [thread:$0]  %s1, 512, %s32, [#allocation6], 128, 128, 8
    $region9: #{tpu_custom_call.1} parent=1 // pred_fallthru
      _
    // Predicated region
    $region10: #{tpu_custom_call.1} parent=1 // pred_check
      _
    $region11: #{tpu_custom_call.1} parent=1 // pred_check_branch
      %39 = sbr.rel (0) target = $region13
    $region12: #{tpu_custom_call.1} parent=1 // pred_region
      _
    $region13: #{tpu_custom_call.1} parent=1 // pred_fallthru
      _
    // Predicated region
    $region14: #{tpu_custom_call.1} parent=1 // pred_check
      _
    $region15: #{tpu_custom_call.1} parent=1 // pred_check_branch
      %41 = sbr.rel (0) target = $region17
    $region16: #{tpu_custom_call.1} parent=1 // pred_region
      %s43 = ssub.s32 512, 512
      %44 = vsyncadd [#allocation6], %s43
      %s45 = sshll.u32 [#allocation7], 4
      %s46 = int_to_ptr.vmem [resolvable:$true] %s45
      %51 = dma.hbm_to_vmem [thread:$0]  %s3, 512, %s46, [#allocation6], 128, 128, 8
    $region17: #{tpu_custom_call.1} parent=1 // pred_fallthru
      _
    // Predicated region
    $region18: #{tpu_custom_call.1} parent=1 // pred_check
      _
    $region19: #{tpu_custom_call.1} parent=1 // pred_check_branch
      %53 = sbr.rel (0) target = $region21
    $region20: #{tpu_custom_call.1} parent=1 // pred_region
      _
    $region21: #{tpu_custom_call.1} parent=1 // pred_fallthru
      _
    // Predicated region
    $region22: #{tpu_custom_call.1} parent=1 // pred_check
      _
    $region23: #{tpu_custom_call.1} parent=1 // pred_check_branch
      %55 = sbr.rel (0) target = $region25
    $region24: #{tpu_custom_call.1} parent=1 // pred_region
      %56 = dma.done [#allocation3], 32
    $region25: #{tpu_custom_call.1} parent=1 // pred_fallthru
      _
    // Predicated region
    $region26: #{tpu_custom_call.1} parent=1 // pred_check
      _
    $region27: #{tpu_custom_call.1} parent=1 // pred_check_branch
      %58 = sbr.rel (0) target = $region29
    $region28: #{tpu_custom_call.1} parent=1 // pred_region
      %59 = dma.done [#allocation6], 512
    $region29: #{tpu_custom_call.1} parent=1 // pred_fallthru
      _
    // Predicated region
    $region30: #{tpu_custom_call.1} parent=1 // pred_check
      _
    $region31: #{tpu_custom_call.1} parent=1 // pred_check_branch
      %61 = sbr.rel (0) target = $region33
    $region32: #{tpu_custom_call.1} parent=1 // pred_region
      %62 = dma.done [#allocation6], 512
    $region33: #{tpu_custom_call.1} parent=1 // pred_fallthru
      _
    %v63 = vld [vmem:[#allocation2] sm:$0x3]
    %v64 = vxor.u32 %v63, 2147483648
    %v65 = vmul.f32 %v64, 1.442695
    %v66 = vpow.pop %v65
    %v67 = vadd.f32 %v66, 1.0
    %v68 = vrcp.pop %v67
    %v69 = vmul.f32 1.0, %v68
    %v70 = vmul.f32 %v63, %v69
    %v71 = vld [vmem:[#allocation5] sm:$0xff]
    %v72 = vld [vmem:[#allocation5 + $0x8] sm:$0xff]
    %v73 = vld [vmem:[#allocation5 + $0x10] sm:$0xff]
    %v74 = vld [vmem:[#allocation5 + $0x18] sm:$0xff]
    %v75 = vld [vmem:[%s2] sm:$0x1]
    %v77 = vlaneseq
    %v78 = vshrl.u32 %v77, 7
    %v79 = vsub.s32 0, %v78
    %v80 = vrot.slane %v75, %v79
    %vm82 = vcmask 261120
    %v84 = vsel %vm82, %v70, 0
    %86 = vmatprep.subr.mxu0 0.0
    %87 = vmatpush1.msra.mxu0 %v71
    %88 = vmatprep.subr.mxu0 0.0
    %89 = vmatpush1.msra.mxu0 %v72
    %90 = vmatprep.subr.mxu0 0.0
    %91 = vmatpush1.msra.mxu0 %v73
    %92 = vmatprep.subr.mxu0 0.0
    %93 = vmatpush1.msra.mxu0 %v74
    %94 = vmatprep.subr.mxu0 0.0
    %95 = vmatpush1.msra.mxu0 0.0
    %96 = vmatprep.subr.mxu0 0.0
    %97 = vmatpush1.msra.mxu0 0.0
    %98 = vmatprep.subr.mxu0 0.0
    %99 = vmatpush1.msra.mxu0 0.0
    %100 = vmatprep.subr.mxu0 0.0
    %101 = vmatpush1.msra.mxu0 0.0
    %102 = vmatprep.subr.mxu0 0.0
    %103 = vmatpush1.msra.mxu0 0.0
    %104 = vmatprep.subr.mxu0 0.0
    %105 = vmatpush1.msra.mxu0 0.0
    %106 = vmatprep.subr.mxu0 0.0
    %107 = vmatpush1.msra.mxu0 0.0
    %108 = vmatprep.subr.mxu0 0.0
    %109 = vmatpush1.msra.mxu0 0.0
    %110 = vmatprep.subr.mxu0 0.0
    %111 = vmatpush1.msra.mxu0 0.0
    %112 = vmatprep.subr.mxu0 0.0
    %113 = vmatpush1.msra.mxu0 0.0
    %114 = vmatprep.subr.mxu0 0.0
    %115 = vmatpush1.msra.mxu0 0.0
    %116 = vmatprep.subr.mxu0 0.0
    %117 = vmatpush1.msra.mxu0 0.0
    %118 = vmatprep.subr.mxu0 0.0
    %119 = vmatpush1.msra.mxu0 0.0
    %120 = vmatprep.subr.mxu0 0.0
    %121 = vmatpush1.msra.mxu0 0.0
    %122 = vmatprep.subr.mxu0 0.0
    %123 = vmatpush1.msra.mxu0 0.0
    %124 = vmatprep.subr.mxu0 0.0
    %125 = vmatpush1.msra.mxu0 0.0
    %126 = vmatprep.subr.mxu0 0.0
    %127 = vmatpush1.msra.mxu0 0.0
    %128 = vmatprep.subr.mxu0 0.0
    %129 = vmatpush1.msra.mxu0 0.0
    %130 = vmatprep.subr.mxu0 0.0
    %131 = vmatpush1.msra.mxu0 0.0
    %132 = vmatprep.subr.mxu0 0.0
    %133 = vmatpush1.msra.mxu0 0.0
    %134 = vmatprep.subr.mxu0 0.0
    %135 = vmatpush1.msra.mxu0 0.0
    %136 = vmatprep.subr.mxu0 0.0
    %137 = vmatpush1.msra.mxu0 0.0
    %138 = vmatprep.subr.mxu0 0.0
    %139 = vmatpush1.msra.mxu0 0.0
    %140 = vmatprep.subr.mxu0 0.0
    %141 = vmatpush1.msra.mxu0 0.0
    %142 = vmatprep.subr.mxu0 0.0
    %143 = vmatpush1.msra.mxu0 0.0
    %144 = vmatprep.subr.mxu0 0.0
    %145 = vmatpush1.msra.mxu0 0.0
    %146 = vmatprep.subr.mxu0 0.0
    %147 = vmatpush1.msra.mxu0 0.0
    %148 = vmatprep.subr.mxu0 0.0
    %149 = vmatpush1.msra.mxu0 0.0
    %150 = vmatprep.mubr.f32.mxu0 0.0
    %151 = vmatmul.mubr.f32.gmra.mrb[0].mxu0 %v84
    %v152 = vpop.f32.mrb[0].mxu0
    %v153 = vadd.f32 %v80, %v152
    %v154 = vpop.f32.mrb[0].mxu0
    %155 = vdwg.mxu0
    %vm156 = vcmask 254976
    %157 = vst.msk [vmem:[#allocation8] sm:$0x3] %vm156, %v153
    %v158 = vld [vmem:[#allocation7] sm:$0xff]
    %v159 = vld [vmem:[#allocation7 + $0x8] sm:$0xff]
    %v160 = vld [vmem:[#allocation7 + $0x10] sm:$0xff]
    %v161 = vld [vmem:[#allocation7 + $0x18] sm:$0xff]
    %v162 = vld [vmem:[%s4] sm:$0x1]
    %v164 = vlaneseq
    %v165 = vshrl.u32 %v164, 7
    %v166 = vsub.s32 0, %v165
    %v167 = vrot.slane %v162, %v166
    %169 = vmatprep.subr.mxu0 0.0
    %170 = vmatpush1.msra.mxu0 %v158
    %171 = vmatprep.subr.mxu0 0.0
    %172 = vmatpush1.msra.mxu0 %v159
    %173 = vmatprep.subr.mxu0 0.0
    %174 = vmatpush1.msra.mxu0 %v160
    %175 = vmatprep.subr.mxu0 0.0
    %176 = vmatpush1.msra.mxu0 %v161
    %177 = vmatprep.subr.mxu0 0.0
    %178 = vmatpush1.msra.mxu0 0.0
    %179 = vmatprep.subr.mxu0 0.0
    %180 = vmatpush1.msra.mxu0 0.0
    %181 = vmatprep.subr.mxu0 0.0
    %182 = vmatpush1.msra.mxu0 0.0
    %183 = vmatprep.subr.mxu0 0.0
    %184 = vmatpush1.msra.mxu0 0.0
    %185 = vmatprep.subr.mxu0 0.0
    %186 = vmatpush1.msra.mxu0 0.0
    %187 = vmatprep.subr.mxu0 0.0
    %188 = vmatpush1.msra.mxu0 0.0
    %189 = vmatprep.subr.mxu0 0.0
    %190 = vmatpush1.msra.mxu0 0.0
    %191 = vmatprep.subr.mxu0 0.0
    %192 = vmatpush1.msra.mxu0 0.0
    %193 = vmatprep.subr.mxu0 0.0
    %194 = vmatpush1.msra.mxu0 0.0
    %195 = vmatprep.subr.mxu0 0.0
    %196 = vmatpush1.msra.mxu0 0.0
    %197 = vmatprep.subr.mxu0 0.0
    %198 = vmatpush1.msra.mxu0 0.0
    %199 = vmatprep.subr.mxu0 0.0
    %200 = vmatpush1.msra.mxu0 0.0
    %201 = vmatprep.subr.mxu0 0.0
    %202 = vmatpush1.msra.mxu0 0.0
    %203 = vmatprep.subr.mxu0 0.0
    %204 = vmatpush1.msra.mxu0 0.0
    %205 = vmatprep.subr.mxu0 0.0
    %206 = vmatpush1.msra.mxu0 0.0
    %207 = vmatprep.subr.mxu0 0.0
    %208 = vmatpush1.msra.mxu0 0.0
    %209 = vmatprep.subr.mxu0 0.0
    %210 = vmatpush1.msra.mxu0 0.0
    %211 = vmatprep.subr.mxu0 0.0
    %212 = vmatpush1.msra.mxu0 0.0
    %213 = vmatprep.subr.mxu0 0.0
    %214 = vmatpush1.msra.mxu0 0.0
    %215 = vmatprep.subr.mxu0 0.0
    %216 = vmatpush1.msra.mxu0 0.0
    %217 = vmatprep.subr.mxu0 0.0
    %218 = vmatpush1.msra.mxu0 0.0
    %219 = vmatprep.subr.mxu0 0.0
    %220 = vmatpush1.msra.mxu0 0.0
    %221 = vmatprep.subr.mxu0 0.0
    %222 = vmatpush1.msra.mxu0 0.0
    %223 = vmatprep.subr.mxu0 0.0
    %224 = vmatpush1.msra.mxu0 0.0
    %225 = vmatprep.subr.mxu0 0.0
    %226 = vmatpush1.msra.mxu0 0.0
    %227 = vmatprep.subr.mxu0 0.0
    %228 = vmatpush1.msra.mxu0 0.0
    %229 = vmatprep.subr.mxu0 0.0
    %230 = vmatpush1.msra.mxu0 0.0
    %231 = vmatprep.subr.mxu0 0.0
    %232 = vmatpush1.msra.mxu0 0.0
    %233 = vmatprep.mubr.f32.mxu0 0.0
    %234 = vmatmul.mubr.f32.gmra.mrb[0].mxu0 %v84
    %v235 = vpop.f32.mrb[0].mxu0
    %v236 = vadd.f32 %v167, %v235
    %v237 = vpop.f32.mrb[0].mxu0
    %238 = vdwg.mxu0
    %239 = vst.msk [vmem:[#allocation9] sm:$0x3] %vm156, %v236
    // Predicated region
    $region34: #{tpu_custom_call.1} parent=1 // pred_check
      _
    $region35: #{tpu_custom_call.1} parent=1 // pred_check_branch
      %241 = sbr.rel (0) target = $region37
    $region36: #{tpu_custom_call.1} parent=1 // pred_region
      %s243 = ssub.s32 32, 32
      %244 = vsyncadd [#allocation4], %s243
      %s246 = sshll.u32 [#allocation8], 4
      %s247 = int_to_ptr.vmem [resolvable:$true] %s246
      %249 = dma.vmem_to_hbm [thread:$0]  %s247, 32, %s5, [#allocation4]
    $region37: #{tpu_custom_call.1} parent=1 // pred_fallthru
      _
    // Predicated region
    $region38: #{tpu_custom_call.1} parent=1 // pred_check
      _
    $region39: #{tpu_custom_call.1} parent=1 // pred_check_branch
      %251 = sbr.rel (0) target = $region41
    $region40: #{tpu_custom_call.1} parent=1 // pred_region
      %s253 = ssub.s32 32, 32
      %254 = vsyncadd [#allocation10], %s253
      %s256 = sshll.u32 [#allocation9], 4
      %s257 = int_to_ptr.vmem [resolvable:$true] %s256
      %259 = dma.vmem_to_hbm [thread:$0]  %s257, 32, %s6, [#allocation10]
    $region41: #{tpu_custom_call.1} parent=1 // pred_fallthru
      _
    // Predicated region
    $region42: #{tpu_custom_call.1} parent=1 // pred_check
      _
    $region43: #{tpu_custom_call.1} parent=1 // pred_check_branch
      %261 = sbr.rel (0) target = $region45
    $region44: #{tpu_custom_call.1} parent=1 // pred_region
      %262 = dma.done [#allocation4], 32
    $region45: #{tpu_custom_call.1} parent=1 // pred_fallthru
      _
    // Predicated region
    $region46: #{tpu_custom_call.1} parent=1 // pred_check
      _
    $region47: #{tpu_custom_call.1} parent=1 // pred_check_branch
      %264 = sbr.rel (0) target = $region49
    $region48: #{tpu_custom_call.1} parent=1 // pred_region
      %265 = dma.done [#allocation10], 32
    $region49: #{tpu_custom_call.1} parent=1 // pred_fallthru
      _
    %266 = vsyncpa [#allocation3], 1
    %267 = vsyncpa [#allocation6], 1
    %268 = vsyncpa [#allocation4], 1
    %269 = vsyncpa [#allocation10], 1

</llo_original>
